<compile_context>
chip_gen: v7x
topology: tpu7x:2x2x1
jax: 0.10.0
libtpu: 0.0.40
codegen_flags: <defaults>
</compile_context>

<pallas_src>
import functools
import math

import jax
import jax.numpy as jnp
from jax.experimental import pallas as pl
from jax.experimental.pallas import tpu as pltpu


def make_haar_low_matrices(H, W, dtype=jnp.float32):
    """matrix_low_0 (H/2, H) and matrix_low_1 (W, W/2) exactly as
    DWT_2D_tiny.get_matrix() builds them for wavename='haar' (f32 coeffs)."""
    band_low = [1.0 / math.sqrt(2.0), 1.0 / math.sqrt(2.0)]  # pywt haar rec_lo
    Hh, Wh = H // 2, W // 2
    rows = jnp.arange(Hh)
    m0 = jnp.zeros((Hh, H), dtype=dtype)
    m0 = m0.at[rows, 2 * rows].set(band_low[0])
    m0 = m0.at[rows, 2 * rows + 1].set(band_low[1])
    cols = jnp.arange(Wh)
    m1t = jnp.zeros((Wh, W), dtype=dtype)
    m1t = m1t.at[cols, 2 * cols].set(band_low[0])
    m1t = m1t.at[cols, 2 * cols + 1].set(band_low[1])
    return m0, m1t.T


def _haar_col_pool_matrix(W, dtype=jnp.float32):
    """(W, W/2) matrix P with P[2j, j] = P[2j+1, j] = 0.5.
    0.5 = (1/sqrt(2))^2 folds both low-pass coefficients; exact in f32."""
    Wh = W // 2
    cols = jnp.arange(Wh)
    p = jnp.zeros((W, Wh), dtype=dtype)
    p = p.at[2 * cols, cols].set(0.5)
    p = p.at[2 * cols + 1, cols].set(0.5)
    return p


def _choose_block_channels(nc, hw, itemsize, budget_bytes):
    """Largest channel tile TC that (a) divides N*C, (b) is a multiple of 8 (or
    the full extent) so the block obeys the (8, 128) rule, (c) fits the VMEM
    budget with double-buffered input + output blocks, preferring an even grid
    length so v7x's two TensorCores both get work (no-op on v5e/v6e)."""
    per_chan = (2 * hw + 2 * (hw // 4)) * itemsize  # 2x in bufs + 2x out bufs
    legal = [tc for tc in range(8, nc + 1, 8) if nc % tc == 0]
    if nc not in legal:
        legal.append(nc)  # full-extent block is always a legal fallback
    fitting = [tc for tc in legal if tc * per_chan <= budget_bytes] or [min(legal)]
    even_grid = [tc for tc in fitting if (nc // tc) % 2 == 0]
    return max(even_grid or fitting)


def _dwt_ll_kernel(x_ref, p_ref, o_ref, *, H, W):
    # x_ref: (TC, H*W)   TC flattened channel images
    # p_ref: (W, W/2)    resident horizontal low-pass pooling matrix (0.5 coeffs)
    # o_ref: (TC, (H/2)*(W/2))
    Hh, Wh = H // 2, W // 2
    p = p_ref[...]                                   # hoisted: loaded once per block
    for i in range(Hh):                              # static unroll, static lane offsets
        a = x_ref[:, pl.ds((2 * i) * W, W)]          # image row 2i     -> (TC, W)
        b = x_ref[:, pl.ds((2 * i + 1) * W, W)]      # image row 2i + 1 -> (TC, W)
        t = a.astype(jnp.float32) + b.astype(jnp.float32)        # vertical pairing (VPU)
        ll = jnp.dot(t, p, preferred_element_type=jnp.float32)   # horizontal pairing (MXU)
        o_ref[:, pl.ds(i * Wh, Wh)] = ll.astype(o_ref.dtype)


def downsample_haar_ll(x, *, vmem_block_budget_bytes=8 * 1024 * 1024):
    """x: (N, C, H, W) -> LL: (N, C, H/2, W/2)  (WaveCNet Downsample, haar)."""
    N, C, H, W = x.shape
    assert H % 2 == 0 and W % 2 == 0, "haar DWT needs even spatial dims"
    Hh, Wh = H // 2, W // 2
    NC, HW = N * C, H * W

    p = _haar_col_pool_matrix(W, jnp.float32)
    x2 = x.reshape(NC, HW)                           # zero-copy row-major view

    itemsize = jnp.dtype(x.dtype).itemsize
    tc = _choose_block_channels(NC, HW, itemsize, vmem_block_budget_bytes)
    grid = (NC // tc,)

    kernel = functools.partial(_dwt_ll_kernel, H=H, W=W)

    out2 = pl.pallas_call(
        kernel,
        out_shape=jax.ShapeDtypeStruct((NC, Hh * Wh), x.dtype),
        grid_spec=pltpu.PrefetchScalarGridSpec(
            num_scalar_prefetch=0,
            grid=grid,
            in_specs=[
                pl.BlockSpec((tc, HW), lambda i: (i, 0)),
                pl.BlockSpec((W, Wh), lambda i: (0, 0)),   # resident, never re-fetched
            ],
            out_specs=pl.BlockSpec((tc, Hh * Wh), lambda i: (i, 0)),
        ),
        compiler_params=pltpu.CompilerParams(
            dimension_semantics=("parallel",),
            vmem_limit_bytes=64 * 1024 * 1024,
        ),
    )(x2, p)

    return out2.reshape(N, C, Hh, Wh)


def downsample_haar_ll_ref(x):
    """Pure-JAX reference: LL = L0 @ x @ L1 per (n, c), f32 coefficients."""
    N, C, H, W = x.shape
    l0, l1 = make_haar_low_matrices(H, W, jnp.float32)
    t = jnp.einsum("ih,nchw->nciw", l0, x.astype(jnp.float32))
    ll = jnp.einsum("nciw,wj->ncij", t, l1)
    return ll.astype(x.dtype)


if __name__ == "__main__":
    key = jax.random.PRNGKey(0)

    # Small shapes consistent with a stride-2 BasicBlock input; second case
    # exercises the batched multi-block grid path (grid length 2).
    for (N, C, H, W) in [(2, 4, 16, 16), (2, 16, 32, 32)]:
        key, sub = jax.random.split(key)
        x = jax.random.normal(sub, (N, C, H, W), dtype=jnp.float32)

        ll = downsample_haar_ll(x)
        jax.block_until_ready(ll)

        ll_ref = downsample_haar_ll_ref(x)
        assert ll.shape == (N, C, H // 2, W // 2)
        assert jnp.allclose(ll, ll_ref, atol=1e-5, rtol=1e-5), (
            f"mismatch for shape {(N, C, H, W)}")

    print("KERNEL_OK")
</pallas_src>

<mosaic_0001>
module attributes {stable_mosaic.version = 11 : i64} {
  func.func @_dwt_ll_kernel(%arg0: i32, %arg1: memref<8x256xf32, #tpu.memory_space<vmem>>, %arg2: memref<16x8xf32, #tpu.memory_space<vmem>>, %arg3: memref<8x64xf32, #tpu.memory_space<vmem>>) attributes {dimension_semantics = [#tpu.dimension_semantics<parallel>], iteration_bounds = array<i64: 1>, scalar_prefetch = 0 : i64, scratch_operands = 0 : i64, tpu.core_type = #tpu.core_type<tc>, window_params = [{transform_indices = @transform_0, window_bounds = array<i64: 8, 256>}, {pipeline_mode = #tpu.pipeline_mode<synchronous>, transform_indices = @transform_1, window_bounds = array<i64: 16, 8>}, {transform_indices = @transform_2, window_bounds = array<i64: 8, 64>}]} {
    %c0 = arith.constant 0 : index
    %c0_0 = arith.constant 0 : index
    %0 = vector.load %arg2[%c0, %c0_0] : memref<16x8xf32, #tpu.memory_space<vmem>>, vector<16x8xf32>
    %c0_1 = arith.constant 0 : index
    %c0_2 = arith.constant 0 : index
    %1 = vector.load %arg1[%c0_1, %c0_2] : memref<8x256xf32, #tpu.memory_space<vmem>>, vector<8x16xf32>
    %c0_3 = arith.constant 0 : index
    %c16 = arith.constant 16 : index
    %2 = vector.load %arg1[%c0_3, %c16] : memref<8x256xf32, #tpu.memory_space<vmem>>, vector<8x16xf32>
    %3 = arith.addf %1, %2 : vector<8x16xf32>
    %cst = arith.constant dense<0.000000e+00> : vector<8x8xf32>
    %4 = tpu.matmul %3, %0, %cst {dimension_numbers = #tpu.dot_dimension_numbers<[1], [0], [0], [1], [0, 0, 1, 1], [], []>} : vector<8x16xf32>, vector<16x8xf32>, vector<8x8xf32> -> vector<8x8xf32>
    %c0_4 = arith.constant 0 : index
    %c0_5 = arith.constant 0 : index
    %5 = vector.load %arg3[%c0_4, %c0_5] : memref<8x64xf32, #tpu.memory_space<vmem>>, vector<8x8xf32>
    tpu.vector_store %arg3[%c0_4, %c0_5], %4 {strides = array<i32>} : memref<8x64xf32, #tpu.memory_space<vmem>>, vector<8x8xf32>,
    %c0_6 = arith.constant 0 : index
    %c32 = arith.constant 32 : index
    %6 = vector.load %arg1[%c0_6, %c32] : memref<8x256xf32, #tpu.memory_space<vmem>>, vector<8x16xf32>
    %c0_7 = arith.constant 0 : index
    %c48 = arith.constant 48 : index
    %7 = vector.load %arg1[%c0_7, %c48] : memref<8x256xf32, #tpu.memory_space<vmem>>, vector<8x16xf32>
    %8 = arith.addf %6, %7 : vector<8x16xf32>
    %cst_8 = arith.constant dense<0.000000e+00> : vector<8x8xf32>
    %9 = tpu.matmul %8, %0, %cst_8 {dimension_numbers = #tpu.dot_dimension_numbers<[1], [0], [0], [1], [0, 0, 1, 1], [], []>} : vector<8x16xf32>, vector<16x8xf32>, vector<8x8xf32> -> vector<8x8xf32>
    %c0_9 = arith.constant 0 : index
    %c8 = arith.constant 8 : index
    %10 = vector.load %arg3[%c0_9, %c8] : memref<8x64xf32, #tpu.memory_space<vmem>>, vector<8x8xf32>
    tpu.vector_store %arg3[%c0_9, %c8], %9 {strides = array<i32>} : memref<8x64xf32, #tpu.memory_space<vmem>>, vector<8x8xf32>,
    %c0_10 = arith.constant 0 : index
    %c64 = arith.constant 64 : index
    %11 = vector.load %arg1[%c0_10, %c64] : memref<8x256xf32, #tpu.memory_space<vmem>>, vector<8x16xf32>
    %c0_11 = arith.constant 0 : index
    %c80 = arith.constant 80 : index
    %12 = vector.load %arg1[%c0_11, %c80] : memref<8x256xf32, #tpu.memory_space<vmem>>, vector<8x16xf32>
    %13 = arith.addf %11, %12 : vector<8x16xf32>
    %cst_12 = arith.constant dense<0.000000e+00> : vector<8x8xf32>
    %14 = tpu.matmul %13, %0, %cst_12 {dimension_numbers = #tpu.dot_dimension_numbers<[1], [0], [0], [1], [0, 0, 1, 1], [], []>} : vector<8x16xf32>, vector<16x8xf32>, vector<8x8xf32> -> vector<8x8xf32>
    %c0_13 = arith.constant 0 : index
    %c16_14 = arith.constant 16 : index
    %15 = vector.load %arg3[%c0_13, %c16_14] : memref<8x64xf32, #tpu.memory_space<vmem>>, vector<8x8xf32>
    tpu.vector_store %arg3[%c0_13, %c16_14], %14 {strides = array<i32>} : memref<8x64xf32, #tpu.memory_space<vmem>>, vector<8x8xf32>,
    %c0_15 = arith.constant 0 : index
    %c96 = arith.constant 96 : index
    %16 = vector.load %arg1[%c0_15, %c96] : memref<8x256xf32, #tpu.memory_space<vmem>>, vector<8x16xf32>
    %c0_16 = arith.constant 0 : index
    %c112 = arith.constant 112 : index
    %17 = vector.load %arg1[%c0_16, %c112] : memref<8x256xf32, #tpu.memory_space<vmem>>, vector<8x16xf32>
    %18 = arith.addf %16, %17 : vector<8x16xf32>
    %cst_17 = arith.constant dense<0.000000e+00> : vector<8x8xf32>
    %19 = tpu.matmul %18, %0, %cst_17 {dimension_numbers = #tpu.dot_dimension_numbers<[1], [0], [0], [1], [0, 0, 1, 1], [], []>} : vector<8x16xf32>, vector<16x8xf32>, vector<8x8xf32> -> vector<8x8xf32>
    %c0_18 = arith.constant 0 : index
    %c24 = arith.constant 24 : index
    %20 = vector.load %arg3[%c0_18, %c24] : memref<8x64xf32, #tpu.memory_space<vmem>>, vector<8x8xf32>
    tpu.vector_store %arg3[%c0_18, %c24], %19 {strides = array<i32>} : memref<8x64xf32, #tpu.memory_space<vmem>>, vector<8x8xf32>,
    %c0_19 = arith.constant 0 : index
    %c128 = arith.constant 128 : index
    %21 = vector.load %arg1[%c0_19, %c128] : memref<8x256xf32, #tpu.memory_space<vmem>>, vector<8x16xf32>
    %c0_20 = arith.constant 0 : index
    %c144 = arith.constant 144 : index
    %22 = vector.load %arg1[%c0_20, %c144] : memref<8x256xf32, #tpu.memory_space<vmem>>, vector<8x16xf32>
    %23 = arith.addf %21, %22 : vector<8x16xf32>
    %cst_21 = arith.constant dense<0.000000e+00> : vector<8x8xf32>
    %24 = tpu.matmul %23, %0, %cst_21 {dimension_numbers = #tpu.dot_dimension_numbers<[1], [0], [0], [1], [0, 0, 1, 1], [], []>} : vector<8x16xf32>, vector<16x8xf32>, vector<8x8xf32> -> vector<8x8xf32>
    %c0_22 = arith.constant 0 : index
    %c32_23 = arith.constant 32 : index
    %25 = vector.load %arg3[%c0_22, %c32_23] : memref<8x64xf32, #tpu.memory_space<vmem>>, vector<8x8xf32>
    tpu.vector_store %arg3[%c0_22, %c32_23], %24 {strides = array<i32>} : memref<8x64xf32, #tpu.memory_space<vmem>>, vector<8x8xf32>,
    %c0_24 = arith.constant 0 : index
    %c160 = arith.constant 160 : index
    %26 = vector.load %arg1[%c0_24, %c160] : memref<8x256xf32, #tpu.memory_space<vmem>>, vector<8x16xf32>
    %c0_25 = arith.constant 0 : index
    %c176 = arith.constant 176 : index
    %27 = vector.load %arg1[%c0_25, %c176] : memref<8x256xf32, #tpu.memory_space<vmem>>, vector<8x16xf32>
    %28 = arith.addf %26, %27 : vector<8x16xf32>
    %cst_26 = arith.constant dense<0.000000e+00> : vector<8x8xf32>
    %29 = tpu.matmul %28, %0, %cst_26 {dimension_numbers = #tpu.dot_dimension_numbers<[1], [0], [0], [1], [0, 0, 1, 1], [], []>} : vector<8x16xf32>, vector<16x8xf32>, vector<8x8xf32> -> vector<8x8xf32>
    %c0_27 = arith.constant 0 : index
    %c40 = arith.constant 40 : index
    %30 = vector.load %arg3[%c0_27, %c40] : memref<8x64xf32, #tpu.memory_space<vmem>>, vector<8x8xf32>
    tpu.vector_store %arg3[%c0_27, %c40], %29 {strides = array<i32>} : memref<8x64xf32, #tpu.memory_space<vmem>>, vector<8x8xf32>,
    %c0_28 = arith.constant 0 : index
    %c192 = arith.constant 192 : index
    %31 = vector.load %arg1[%c0_28, %c192] : memref<8x256xf32, #tpu.memory_space<vmem>>, vector<8x16xf32>
    %c0_29 = arith.constant 0 : index
    %c208 = arith.constant 208 : index
    %32 = vector.load %arg1[%c0_29, %c208] : memref<8x256xf32, #tpu.memory_space<vmem>>, vector<8x16xf32>
    %33 = arith.addf %31, %32 : vector<8x16xf32>
    %cst_30 = arith.constant dense<0.000000e+00> : vector<8x8xf32>
    %34 = tpu.matmul %33, %0, %cst_30 {dimension_numbers = #tpu.dot_dimension_numbers<[1], [0], [0], [1], [0, 0, 1, 1], [], []>} : vector<8x16xf32>, vector<16x8xf32>, vector<8x8xf32> -> vector<8x8xf32>
    %c0_31 = arith.constant 0 : index
    %c48_32 = arith.constant 48 : index
    %35 = vector.load %arg3[%c0_31, %c48_32] : memref<8x64xf32, #tpu.memory_space<vmem>>, vector<8x8xf32>
    tpu.vector_store %arg3[%c0_31, %c48_32], %34 {strides = array<i32>} : memref<8x64xf32, #tpu.memory_space<vmem>>, vector<8x8xf32>,
    %c0_33 = arith.constant 0 : index
    %c224 = arith.constant 224 : index
    %36 = vector.load %arg1[%c0_33, %c224] : memref<8x256xf32, #tpu.memory_space<vmem>>, vector<8x16xf32>
    %c0_34 = arith.constant 0 : index
    %c240 = arith.constant 240 : index
    %37 = vector.load %arg1[%c0_34, %c240] : memref<8x256xf32, #tpu.memory_space<vmem>>, vector<8x16xf32>
    %38 = arith.addf %36, %37 : vector<8x16xf32>
    %cst_35 = arith.constant dense<0.000000e+00> : vector<8x8xf32>
    %39 = tpu.matmul %38, %0, %cst_35 {dimension_numbers = #tpu.dot_dimension_numbers<[1], [0], [0], [1], [0, 0, 1, 1], [], []>} : vector<8x16xf32>, vector<16x8xf32>, vector<8x8xf32> -> vector<8x8xf32>
    %c0_36 = arith.constant 0 : index
    %c56 = arith.constant 56 : index
    %40 = vector.load %arg3[%c0_36, %c56] : memref<8x64xf32, #tpu.memory_space<vmem>>, vector<8x8xf32>
    tpu.vector_store %arg3[%c0_36, %c56], %39 {strides = array<i32>} : memref<8x64xf32, #tpu.memory_space<vmem>>, vector<8x8xf32>,
    return
  }
  func.func @transform_0(%arg0: i32) -> (i32, i32) {
    %c0_i32 = arith.constant 0 : i32
    %c0_i32_0 = arith.constant 0 : i32
    return %arg0, %c0_i32 : i32, i32
  }
  func.func @transform_1(%arg0: i32) -> (i32, i32) {
    %c0_i32 = arith.constant 0 : i32
    %c0_i32_0 = arith.constant 0 : i32
    %c0_i32_1 = arith.constant 0 : i32
    return %c0_i32, %c0_i32_0 : i32, i32
  }
  func.func @transform_2(%arg0: i32) -> (i32, i32) {
    %c0_i32 = arith.constant 0 : i32
    %c0_i32_0 = arith.constant 0 : i32
    return %arg0, %c0_i32 : i32, i32
  }
}

</mosaic_0001>

<llo_original>
// kernel: tpu_custom_call.1
$region0: #{tpu_custom_call.1}
  #allocation0 [shape = 'u32[]', space=smem, size = 0x4, offset = 0x4, fixed_abs, tag = 'smem constant byte address 0x4 - core index']
  #allocation1 [shape = 'u32[144,128]{1,0:T(1,128)}', space=vmem, size = 0x12000, scoped, tag = 'internal scratch']
  %s0 = inlined_call_operand.hbm [shape: f32[8,256], index: 0, kind: input, shape index: {}]
  %s1 = inlined_call_operand.hbm [shape: f32[16,8], index: 1, kind: input, shape index: {}]
  %s2 = inlined_call_operand.hbm [shape: f32[8,64], index: 2, kind: output, shape index: {}]
  %s3 = sld [smem:[#allocation0]]
  $region26: #{tpu_custom_call.1} parent=0
    _
  %s5 = ssub.s32 1, %s3
  %s6 = scalar_select 0, %s5, %s3
  $region1: #{tpu_custom_call.1} parent=0
    #allocation2 [shape = 'u8[8192]{0}', space=vmem, size = 0x2000, scoped, tag = 'input window, operand 0, single buffered']
    #allocation3 [shape = 's32[1]{0}', space=sflag, size = 0x4, scoped, tag = 'scoped memory for tpu_custom_call.1']
    #allocation4 [shape = 's32[1]{0}', space=sflag, size = 0x4, scoped, tag = 'scoped memory for tpu_custom_call.1']
    #allocation5 [shape = 'u8[8192]{0}', space=vmem, size = 0x2000, scoped, tag = 'input window, operand 1, single buffered']
    #allocation6 [shape = 's32[1]{0}', space=sflag, size = 0x4, scoped, tag = 'scoped memory for tpu_custom_call.1']
    #allocation7 [shape = 'u8[4096]{0}', space=vmem, size = 0x1000, scoped, tag = 'output window, operand 0, single buffered']
    %7 = vsyncpa [#allocation3], 0
    %8 = vsyncpa [#allocation6], 0
    %9 = vsyncpa [#allocation4], 0
    // Predicated region
    $region2: #{tpu_custom_call.1} parent=1 // pred_check
      _
    $region3: #{tpu_custom_call.1} parent=1 // pred_check_branch
      %11 = sbr.rel (0) target = $region5
    $region4: #{tpu_custom_call.1} parent=1 // pred_region
      %s13 = ssub.s32 256, 256
      %14 = vsyncadd [#allocation3], %s13
      %s16 = sshll.u32 [#allocation2], 4
      %s17 = int_to_ptr.vmem [resolvable:$true] %s16
      %19 = dma.hbm_to_vmem [thread:$0]  %s0, 256, %s17, [#allocation3]
    $region5: #{tpu_custom_call.1} parent=1 // pred_fallthru
      _
    // Predicated region
    $region6: #{tpu_custom_call.1} parent=1 // pred_check
      _
    $region7: #{tpu_custom_call.1} parent=1 // pred_check_branch
      %21 = sbr.rel (0) target = $region9
    $region8: #{tpu_custom_call.1} parent=1 // pred_region
      %s23 = ssub.s32 256, 256
      %24 = vsyncadd [#allocation6], %s23
      %s25 = sshll.u32 [#allocation5], 4
      %s26 = int_to_ptr.vmem [resolvable:$true] %s25
      %31 = dma.hbm_to_vmem [thread:$0]  %s1, 256, %s26, [#allocation6], 128, 128, 8
    $region9: #{tpu_custom_call.1} parent=1 // pred_fallthru
      _
    // Predicated region
    $region10: #{tpu_custom_call.1} parent=1 // pred_check
      _
    $region11: #{tpu_custom_call.1} parent=1 // pred_check_branch
      %33 = sbr.rel (0) target = $region13
    $region12: #{tpu_custom_call.1} parent=1 // pred_region
      %34 = dma.done [#allocation3], 256
    $region13: #{tpu_custom_call.1} parent=1 // pred_fallthru
      _
    // Predicated region
    $region14: #{tpu_custom_call.1} parent=1 // pred_check
      _
    $region15: #{tpu_custom_call.1} parent=1 // pred_check_branch
      %36 = sbr.rel (0) target = $region17
    $region16: #{tpu_custom_call.1} parent=1 // pred_region
      %37 = dma.done [#allocation6], 256
    $region17: #{tpu_custom_call.1} parent=1 // pred_fallthru
      _
    %v38 = vld [vmem:[#allocation5] sm:$0xff]
    %v39 = vld [vmem:[#allocation5 + $0x8] sm:$0xff]
    %v40 = vld [vmem:[#allocation2] sm:$0xff]
    %42 = vrot.lane.b32.xlu0 %v40, 112
    %v43 = vpop.permute.xlu0 %42
    %v45 = vadd.f32 %v40, %v43
    %vm46 = vcmask 130048
    %v48 = vsel %vm46, %v45, 0
    %50 = vmatprep.subr.mxu0 0.0
    %51 = vmatpush1.msra.mxu0 %v38
    %52 = vmatprep.subr.mxu0 0.0
    %53 = vmatpush1.msra.mxu0 %v39
    %54 = vmatprep.subr.mxu0 0.0
    %55 = vmatpush1.msra.mxu0 0.0
    %56 = vmatprep.subr.mxu0 0.0
    %57 = vmatpush1.msra.mxu0 0.0
    %58 = vmatprep.subr.mxu0 0.0
    %59 = vmatpush1.msra.mxu0 0.0
    %60 = vmatprep.subr.mxu0 0.0
    %61 = vmatpush1.msra.mxu0 0.0
    %62 = vmatprep.subr.mxu0 0.0
    %63 = vmatpush1.msra.mxu0 0.0
    %64 = vmatprep.subr.mxu0 0.0
    %65 = vmatpush1.msra.mxu0 0.0
    %66 = vmatprep.subr.mxu0 0.0
    %67 = vmatpush1.msra.mxu0 0.0
    %68 = vmatprep.subr.mxu0 0.0
    %69 = vmatpush1.msra.mxu0 0.0
    %70 = vmatprep.subr.mxu0 0.0
    %71 = vmatpush1.msra.mxu0 0.0
    %72 = vmatprep.subr.mxu0 0.0
    %73 = vmatpush1.msra.mxu0 0.0
    %74 = vmatprep.subr.mxu0 0.0
    %75 = vmatpush1.msra.mxu0 0.0
    %76 = vmatprep.subr.mxu0 0.0
    %77 = vmatpush1.msra.mxu0 0.0
    %78 = vmatprep.subr.mxu0 0.0
    %79 = vmatpush1.msra.mxu0 0.0
    %80 = vmatprep.subr.mxu0 0.0
    %81 = vmatpush1.msra.mxu0 0.0
    %82 = vmatprep.subr.mxu0 0.0
    %83 = vmatpush1.msra.mxu0 0.0
    %84 = vmatprep.subr.mxu0 0.0
    %85 = vmatpush1.msra.mxu0 0.0
    %86 = vmatprep.subr.mxu0 0.0
    %87 = vmatpush1.msra.mxu0 0.0
    %88 = vmatprep.subr.mxu0 0.0
    %89 = vmatpush1.msra.mxu0 0.0
    %90 = vmatprep.subr.mxu0 0.0
    %91 = vmatpush1.msra.mxu0 0.0
    %92 = vmatprep.subr.mxu0 0.0
    %93 = vmatpush1.msra.mxu0 0.0
    %94 = vmatprep.subr.mxu0 0.0
    %95 = vmatpush1.msra.mxu0 0.0
    %96 = vmatprep.subr.mxu0 0.0
    %97 = vmatpush1.msra.mxu0 0.0
    %98 = vmatprep.subr.mxu0 0.0
    %99 = vmatpush1.msra.mxu0 0.0
    %100 = vmatprep.subr.mxu0 0.0
    %101 = vmatpush1.msra.mxu0 0.0
    %102 = vmatprep.subr.mxu0 0.0
    %103 = vmatpush1.msra.mxu0 0.0
    %104 = vmatprep.subr.mxu0 0.0
    %105 = vmatpush1.msra.mxu0 0.0
    %106 = vmatprep.subr.mxu0 0.0
    %107 = vmatpush1.msra.mxu0 0.0
    %108 = vmatprep.subr.mxu0 0.0
    %109 = vmatpush1.msra.mxu0 0.0
    %110 = vmatprep.subr.mxu0 0.0
    %111 = vmatpush1.msra.mxu0 0.0
    %112 = vmatprep.subr.mxu0 0.0
    %113 = vmatpush1.msra.mxu0 0.0
    %114 = vmatprep.mubr.f32.mxu0 0.0
    %115 = vmatmul.mubr.f32.gmra.mrb[0].mxu0 %v48
    %v116 = vpop.f32.mrb[0].mxu0
    %v117 = vadd.f32 0.0, %v116
    %v118 = vpop.f32.mrb[0].mxu0
    %119 = vdwg.mxu0
    %vm120 = vcmask 64512
    %121 = vst.msk [vmem:[#allocation7] sm:$0xff] %vm120, %v117
    %v122 = vld [vmem:[#allocation2] sm:$0xff]
    %124 = vrot.lane.b32.xlu0 %v122, 112
    %v125 = vpop.permute.xlu0 %124
    %v127 = vadd.f32 %v122, %v125
    %129 = vrot.lane.b32.xlu0 %v127, 96
    %v130 = vpop.permute.xlu0 %129
    %v131 = vsel %vm46, %v130, 0
    %133 = vmatprep.subr.mxu0 0.0
    %134 = vmatpush1.msra.mxu0 %v38
    %135 = vmatprep.subr.mxu0 0.0
    %136 = vmatpush1.msra.mxu0 %v39
    %137 = vmatprep.subr.mxu0 0.0
    %138 = vmatpush1.msra.mxu0 0.0
    %139 = vmatprep.subr.mxu0 0.0
    %140 = vmatpush1.msra.mxu0 0.0
    %141 = vmatprep.subr.mxu0 0.0
    %142 = vmatpush1.msra.mxu0 0.0
    %143 = vmatprep.subr.mxu0 0.0
    %144 = vmatpush1.msra.mxu0 0.0
    %145 = vmatprep.subr.mxu0 0.0
    %146 = vmatpush1.msra.mxu0 0.0
    %147 = vmatprep.subr.mxu0 0.0
    %148 = vmatpush1.msra.mxu0 0.0
    %149 = vmatprep.subr.mxu0 0.0
    %150 = vmatpush1.msra.mxu0 0.0
    %151 = vmatprep.subr.mxu0 0.0
    %152 = vmatpush1.msra.mxu0 0.0
    %153 = vmatprep.subr.mxu0 0.0
    %154 = vmatpush1.msra.mxu0 0.0
    %155 = vmatprep.subr.mxu0 0.0
    %156 = vmatpush1.msra.mxu0 0.0
    %157 = vmatprep.subr.mxu0 0.0
    %158 = vmatpush1.msra.mxu0 0.0
    %159 = vmatprep.subr.mxu0 0.0
    %160 = vmatpush1.msra.mxu0 0.0
    %161 = vmatprep.subr.mxu0 0.0
    %162 = vmatpush1.msra.mxu0 0.0
    %163 = vmatprep.subr.mxu0 0.0
    %164 = vmatpush1.msra.mxu0 0.0
    %165 = vmatprep.subr.mxu0 0.0
    %166 = vmatpush1.msra.mxu0 0.0
    %167 = vmatprep.subr.mxu0 0.0
    %168 = vmatpush1.msra.mxu0 0.0
    %169 = vmatprep.subr.mxu0 0.0
    %170 = vmatpush1.msra.mxu0 0.0
    %171 = vmatprep.subr.mxu0 0.0
    %172 = vmatpush1.msra.mxu0 0.0
    %173 = vmatprep.subr.mxu0 0.0
    %174 = vmatpush1.msra.mxu0 0.0
    %175 = vmatprep.subr.mxu0 0.0
    %176 = vmatpush1.msra.mxu0 0.0
    %177 = vmatprep.subr.mxu0 0.0
    %178 = vmatpush1.msra.mxu0 0.0
    %179 = vmatprep.subr.mxu0 0.0
    %180 = vmatpush1.msra.mxu0 0.0
    %181 = vmatprep.subr.mxu0 0.0
    %182 = vmatpush1.msra.mxu0 0.0
    %183 = vmatprep.subr.mxu0 0.0
    %184 = vmatpush1.msra.mxu0 0.0
    %185 = vmatprep.subr.mxu0 0.0
    %186 = vmatpush1.msra.mxu0 0.0
    %187 = vmatprep.subr.mxu0 0.0
    %188 = vmatpush1.msra.mxu0 0.0
    %189 = vmatprep.subr.mxu0 0.0
    %190 = vmatpush1.msra.mxu0 0.0
    %191 = vmatprep.subr.mxu0 0.0
    %192 = vmatpush1.msra.mxu0 0.0
    %193 = vmatprep.subr.mxu0 0.0
    %194 = vmatpush1.msra.mxu0 0.0
    %195 = vmatprep.subr.mxu0 0.0
    %196 = vmatpush1.msra.mxu0 0.0
    %197 = vmatprep.mubr.f32.mxu0 0.0
    %198 = vmatmul.mubr.f32.gmra.mrb[0].mxu0 %v131
    %v199 = vpop.f32.mrb[0].mxu0
    %v200 = vadd.f32 0.0, %v199
    %v201 = vpop.f32.mrb[0].mxu0
    %202 = vdwg.mxu0
    %204 = vrot.lane.b32.xlu0 %v200, 8
    %v205 = vpop.permute.xlu0 %204
    %vm207 = vcmask 130112
    %208 = vst.msk [vmem:[#allocation7] sm:$0xff] %vm207, %v205
    %v209 = vld [vmem:[#allocation2] sm:$0xff]
    %211 = vrot.lane.b32.xlu0 %v209, 112
    %v212 = vpop.permute.xlu0 %211
    %v214 = vadd.f32 %v209, %v212
    %216 = vrot.lane.b32.xlu0 %v214, 64
    %v217 = vpop.permute.xlu0 %216
    %v218 = vsel %vm46, %v217, 0
    %220 = vmatprep.subr.mxu0 0.0
    %221 = vmatpush1.msra.mxu0 %v38
    %222 = vmatprep.subr.mxu0 0.0
    %223 = vmatpush1.msra.mxu0 %v39
    %224 = vmatprep.subr.mxu0 0.0
    %225 = vmatpush1.msra.mxu0 0.0
    %226 = vmatprep.subr.mxu0 0.0
    %227 = vmatpush1.msra.mxu0 0.0
    %228 = vmatprep.subr.mxu0 0.0
    %229 = vmatpush1.msra.mxu0 0.0
    %230 = vmatprep.subr.mxu0 0.0
    %231 = vmatpush1.msra.mxu0 0.0
    %232 = vmatprep.subr.mxu0 0.0
    %233 = vmatpush1.msra.mxu0 0.0
    %234 = vmatprep.subr.mxu0 0.0
    %235 = vmatpush1.msra.mxu0 0.0
    %236 = vmatprep.subr.mxu0 0.0
    %237 = vmatpush1.msra.mxu0 0.0
    %238 = vmatprep.subr.mxu0 0.0
    %239 = vmatpush1.msra.mxu0 0.0
    %240 = vmatprep.subr.mxu0 0.0
    %241 = vmatpush1.msra.mxu0 0.0
    %242 = vmatprep.subr.mxu0 0.0
    %243 = vmatpush1.msra.mxu0 0.0
    %244 = vmatprep.subr.mxu0 0.0
    %245 = vmatpush1.msra.mxu0 0.0
    %246 = vmatprep.subr.mxu0 0.0
    %247 = vmatpush1.msra.mxu0 0.0
    %248 = vmatprep.subr.mxu0 0.0
    %249 = vmatpush1.msra.mxu0 0.0
    %250 = vmatprep.subr.mxu0 0.0
    %251 = vmatpush1.msra.mxu0 0.0
    %252 = vmatprep.subr.mxu0 0.0
    %253 = vmatpush1.msra.mxu0 0.0
    %254 = vmatprep.subr.mxu0 0.0
    %255 = vmatpush1.msra.mxu0 0.0
    %256 = vmatprep.subr.mxu0 0.0
    %257 = vmatpush1.msra.mxu0 0.0
    %258 = vmatprep.subr.mxu0 0.0
    %259 = vmatpush1.msra.mxu0 0.0
    %260 = vmatprep.subr.mxu0 0.0
    %261 = vmatpush1.msra.mxu0 0.0
    %262 = vmatprep.subr.mxu0 0.0
    %263 = vmatpush1.msra.mxu0 0.0
    %264 = vmatprep.subr.mxu0 0.0
    %265 = vmatpush1.msra.mxu0 0.0
    %266 = vmatprep.subr.mxu0 0.0
    %267 = vmatpush1.msra.mxu0 0.0
    %268 = vmatprep.subr.mxu0 0.0
    %269 = vmatpush1.msra.mxu0 0.0
    %270 = vmatprep.subr.mxu0 0.0
    %271 = vmatpush1.msra.mxu0 0.0
    %272 = vmatprep.subr.mxu0 0.0
    %273 = vmatpush1.msra.mxu0 0.0
    %274 = vmatprep.subr.mxu0 0.0
    %275 = vmatpush1.msra.mxu0 0.0
    %276 = vmatprep.subr.mxu0 0.0
    %277 = vmatpush1.msra.mxu0 0.0
    %278 = vmatprep.subr.mxu0 0.0
    %279 = vmatpush1.msra.mxu0 0.0
    %280 = vmatprep.subr.mxu0 0.0
    %281 = vmatpush1.msra.mxu0 0.0
    %282 = vmatprep.subr.mxu0 0.0
    %283 = vmatpush1.msra.mxu0 0.0
    %284 = vmatprep.mubr.f32.mxu0 0.0
    %285 = vmatmul.mubr.f32.gmra.mrb[0].mxu0 %v218
    %v286 = vpop.f32.mrb[0].mxu0
    %v287 = vadd.f32 0.0, %v286
    %v288 = vpop.f32.mrb[0].mxu0
    %289 = vdwg.mxu0
    %291 = vrot.lane.b32.xlu0 %v287, 16
    %v292 = vpop.permute.xlu0 %291
    %vm294 = vcmask 195712
    %295 = vst.msk [vmem:[#allocation7] sm:$0xff] %vm294, %v292
    %v296 = vld [vmem:[#allocation2] sm:$0xff]
    %298 = vrot.lane.b32.xlu0 %v296, 112
    %v299 = vpop.permute.xlu0 %298
    %v301 = vadd.f32 %v296, %v299
    %303 = vrot.lane.b32.xlu0 %v301, 32
    %v304 = vpop.permute.xlu0 %303
    %v305 = vsel %vm46, %v304, 0
    %307 = vmatprep.subr.mxu0 0.0
    %308 = vmatpush1.msra.mxu0 %v38
    %309 = vmatprep.subr.mxu0 0.0
    %310 = vmatpush1.msra.mxu0 %v39
    %311 = vmatprep.subr.mxu0 0.0
    %312 = vmatpush1.msra.mxu0 0.0
    %313 = vmatprep.subr.mxu0 0.0
    %314 = vmatpush1.msra.mxu0 0.0
    %315 = vmatprep.subr.mxu0 0.0
    %316 = vmatpush1.msra.mxu0 0.0
    %317 = vmatprep.subr.mxu0 0.0
    %318 = vmatpush1.msra.mxu0 0.0
    %319 = vmatprep.subr.mxu0 0.0
    %320 = vmatpush1.msra.mxu0 0.0
    %321 = vmatprep.subr.mxu0 0.0
    %322 = vmatpush1.msra.mxu0 0.0
    %323 = vmatprep.subr.mxu0 0.0
    %324 = vmatpush1.msra.mxu0 0.0
    %325 = vmatprep.subr.mxu0 0.0
    %326 = vmatpush1.msra.mxu0 0.0
    %327 = vmatprep.subr.mxu0 0.0
    %328 = vmatpush1.msra.mxu0 0.0
    %329 = vmatprep.subr.mxu0 0.0
    %330 = vmatpush1.msra.mxu0 0.0
    %331 = vmatprep.subr.mxu0 0.0
    %332 = vmatpush1.msra.mxu0 0.0
    %333 = vmatprep.subr.mxu0 0.0
    %334 = vmatpush1.msra.mxu0 0.0
    %335 = vmatprep.subr.mxu0 0.0
    %336 = vmatpush1.msra.mxu0 0.0
    %337 = vmatprep.subr.mxu0 0.0
    %338 = vmatpush1.msra.mxu0 0.0
    %339 = vmatprep.subr.mxu0 0.0
    %340 = vmatpush1.msra.mxu0 0.0
    %341 = vmatprep.subr.mxu0 0.0
    %342 = vmatpush1.msra.mxu0 0.0
    %343 = vmatprep.subr.mxu0 0.0
    %344 = vmatpush1.msra.mxu0 0.0
    %345 = vmatprep.subr.mxu0 0.0
    %346 = vmatpush1.msra.mxu0 0.0
    %347 = vmatprep.subr.mxu0 0.0
    %348 = vmatpush1.msra.mxu0 0.0
    %349 = vmatprep.subr.mxu0 0.0
    %350 = vmatpush1.msra.mxu0 0.0
    %351 = vmatprep.subr.mxu0 0.0
    %352 = vmatpush1.msra.mxu0 0.0
    %353 = vmatprep.subr.mxu0 0.0
    %354 = vmatpush1.msra.mxu0 0.0
    %355 = vmatprep.subr.mxu0 0.0
    %356 = vmatpush1.msra.mxu0 0.0
    %357 = vmatprep.subr.mxu0 0.0
    %358 = vmatpush1.msra.mxu0 0.0
    %359 = vmatprep.subr.mxu0 0.0
    %360 = vmatpush1.msra.mxu0 0.0
    %361 = vmatprep.subr.mxu0 0.0
    %362 = vmatpush1.msra.mxu0 0.0
    %363 = vmatprep.subr.mxu0 0.0
    %364 = vmatpush1.msra.mxu0 0.0
    %365 = vmatprep.subr.mxu0 0.0
    %366 = vmatpush1.msra.mxu0 0.0
    %367 = vmatprep.subr.mxu0 0.0
    %368 = vmatpush1.msra.mxu0 0.0
    %369 = vmatprep.subr.mxu0 0.0
    %370 = vmatpush1.msra.mxu0 0.0
    %371 = vmatprep.mubr.f32.mxu0 0.0
    %372 = vmatmul.mubr.f32.gmra.mrb[0].mxu0 %v305
    %v373 = vpop.f32.mrb[0].mxu0
    %v374 = vadd.f32 0.0, %v373
    %v375 = vpop.f32.mrb[0].mxu0
    %376 = vdwg.mxu0
    %378 = vrot.lane.b32.xlu0 %v374, 24
    %v379 = vpop.permute.xlu0 %378
    %vm381 = vcmask 261312
    %382 = vst.msk [vmem:[#allocation7] sm:$0xff] %vm381, %v379
    %v383 = vld [vmem:[#allocation2 + $0x8] sm:$0xff]
    %385 = vrot.lane.b32.xlu0 %v383, 112
    %v386 = vpop.permute.xlu0 %385
    %v388 = vadd.f32 %v383, %v386
    %v390 = vsel %vm46, %v388, 0
    %392 = vmatprep.subr.mxu0 0.0
    %393 = vmatpush1.msra.mxu0 %v38
    %394 = vmatprep.subr.mxu0 0.0
    %395 = vmatpush1.msra.mxu0 %v39
    %396 = vmatprep.subr.mxu0 0.0
    %397 = vmatpush1.msra.mxu0 0.0
    %398 = vmatprep.subr.mxu0 0.0
    %399 = vmatpush1.msra.mxu0 0.0
    %400 = vmatprep.subr.mxu0 0.0
    %401 = vmatpush1.msra.mxu0 0.0
    %402 = vmatprep.subr.mxu0 0.0
    %403 = vmatpush1.msra.mxu0 0.0
    %404 = vmatprep.subr.mxu0 0.0
    %405 = vmatpush1.msra.mxu0 0.0
    %406 = vmatprep.subr.mxu0 0.0
    %407 = vmatpush1.msra.mxu0 0.0
    %408 = vmatprep.subr.mxu0 0.0
    %409 = vmatpush1.msra.mxu0 0.0
    %410 = vmatprep.subr.mxu0 0.0
    %411 = vmatpush1.msra.mxu0 0.0
    %412 = vmatprep.subr.mxu0 0.0
    %413 = vmatpush1.msra.mxu0 0.0
    %414 = vmatprep.subr.mxu0 0.0
    %415 = vmatpush1.msra.mxu0 0.0
    %416 = vmatprep.subr.mxu0 0.0
    %417 = vmatpush1.msra.mxu0 0.0
    %418 = vmatprep.subr.mxu0 0.0
    %419 = vmatpush1.msra.mxu0 0.0
    %420 = vmatprep.subr.mxu0 0.0
    %421 = vmatpush1.msra.mxu0 0.0
    %422 = vmatprep.subr.mxu0 0.0
    %423 = vmatpush1.msra.mxu0 0.0
    %424 = vmatprep.subr.mxu0 0.0
    %425 = vmatpush1.msra.mxu0 0.0
    %426 = vmatprep.subr.mxu0 0.0
    %427 = vmatpush1.msra.mxu0 0.0
    %428 = vmatprep.subr.mxu0 0.0
    %429 = vmatpush1.msra.mxu0 0.0
    %430 = vmatprep.subr.mxu0 0.0
    %431 = vmatpush1.msra.mxu0 0.0
    %432 = vmatprep.subr.mxu0 0.0
    %433 = vmatpush1.msra.mxu0 0.0
    %434 = vmatprep.subr.mxu0 0.0
    %435 = vmatpush1.msra.mxu0 0.0
    %436 = vmatprep.subr.mxu0 0.0
    %437 = vmatpush1.msra.mxu0 0.0
    %438 = vmatprep.subr.mxu0 0.0
    %439 = vmatpush1.msra.mxu0 0.0
    %440 = vmatprep.subr.mxu0 0.0
    %441 = vmatpush1.msra.mxu0 0.0
    %442 = vmatprep.subr.mxu0 0.0
    %443 = vmatpush1.msra.mxu0 0.0
    %444 = vmatprep.subr.mxu0 0.0
    %445 = vmatpush1.msra.mxu0 0.0
    %446 = vmatprep.subr.mxu0 0.0
    %447 = vmatpush1.msra.mxu0 0.0
    %448 = vmatprep.subr.mxu0 0.0
    %449 = vmatpush1.msra.mxu0 0.0
    %450 = vmatprep.subr.mxu0 0.0
    %451 = vmatpush1.msra.mxu0 0.0
    %452 = vmatprep.subr.mxu0 0.0
    %453 = vmatpush1.msra.mxu0 0.0
    %454 = vmatprep.subr.mxu0 0.0
    %455 = vmatpush1.msra.mxu0 0.0
    %456 = vmatprep.mubr.f32.mxu0 0.0
    %457 = vmatmul.mubr.f32.gmra.mrb[0].mxu0 %v390
    %v458 = vpop.f32.mrb[0].mxu0
    %v459 = vadd.f32 0.0, %v458
    %v460 = vpop.f32.mrb[0].mxu0
    %461 = vdwg.mxu0
    %463 = vrot.lane.b32.xlu0 %v459, 32
    %v464 = vpop.permute.xlu0 %463
    %vm466 = vcmask 326912
    %467 = vst.msk [vmem:[#allocation7] sm:$0xff] %vm466, %v464
    %v468 = vld [vmem:[#allocation2 + $0x8] sm:$0xff]
    %470 = vrot.lane.b32.xlu0 %v468, 112
    %v471 = vpop.permute.xlu0 %470
    %v473 = vadd.f32 %v468, %v471
    %475 = vrot.lane.b32.xlu0 %v473, 96
    %v476 = vpop.permute.xlu0 %475
    %v477 = vsel %vm46, %v476, 0
    %479 = vmatprep.subr.mxu0 0.0
    %480 = vmatpush1.msra.mxu0 %v38
    %481 = vmatprep.subr.mxu0 0.0
    %482 = vmatpush1.msra.mxu0 %v39
    %483 = vmatprep.subr.mxu0 0.0
    %484 = vmatpush1.msra.mxu0 0.0
    %485 = vmatprep.subr.mxu0 0.0
    %486 = vmatpush1.msra.mxu0 0.0
    %487 = vmatprep.subr.mxu0 0.0
    %488 = vmatpush1.msra.mxu0 0.0
    %489 = vmatprep.subr.mxu0 0.0
    %490 = vmatpush1.msra.mxu0 0.0
    %491 = vmatprep.subr.mxu0 0.0
    %492 = vmatpush1.msra.mxu0 0.0
    %493 = vmatprep.subr.mxu0 0.0
    %494 = vmatpush1.msra.mxu0 0.0
    %495 = vmatprep.subr.mxu0 0.0
    %496 = vmatpush1.msra.mxu0 0.0
    %497 = vmatprep.subr.mxu0 0.0
    %498 = vmatpush1.msra.mxu0 0.0
    %499 = vmatprep.subr.mxu0 0.0
    %500 = vmatpush1.msra.mxu0 0.0
    %501 = vmatprep.subr.mxu0 0.0
    %502 = vmatpush1.msra.mxu0 0.0
    %503 = vmatprep.subr.mxu0 0.0
    %504 = vmatpush1.msra.mxu0 0.0
    %505 = vmatprep.subr.mxu0 0.0
    %506 = vmatpush1.msra.mxu0 0.0
    %507 = vmatprep.subr.mxu0 0.0
    %508 = vmatpush1.msra.mxu0 0.0
    %509 = vmatprep.subr.mxu0 0.0
    %510 = vmatpush1.msra.mxu0 0.0
    %511 = vmatprep.subr.mxu0 0.0
    %512 = vmatpush1.msra.mxu0 0.0
    %513 = vmatprep.subr.mxu0 0.0
    %514 = vmatpush1.msra.mxu0 0.0
    %515 = vmatprep.subr.mxu0 0.0
    %516 = vmatpush1.msra.mxu0 0.0
    %517 = vmatprep.subr.mxu0 0.0
    %518 = vmatpush1.msra.mxu0 0.0
    %519 = vmatprep.subr.mxu0 0.0
    %520 = vmatpush1.msra.mxu0 0.0
    %521 = vmatprep.subr.mxu0 0.0
    %522 = vmatpush1.msra.mxu0 0.0
    %523 = vmatprep.subr.mxu0 0.0
    %524 = vmatpush1.msra.mxu0 0.0
    %525 = vmatprep.subr.mxu0 0.0
    %526 = vmatpush1.msra.mxu0 0.0
    %527 = vmatprep.subr.mxu0 0.0
    %528 = vmatpush1.msra.mxu0 0.0
    %529 = vmatprep.subr.mxu0 0.0
    %530 = vmatpush1.msra.mxu0 0.0
    %531 = vmatprep.subr.mxu0 0.0
    %532 = vmatpush1.msra.mxu0 0.0
    %533 = vmatprep.subr.mxu0 0.0
    %534 = vmatpush1.msra.mxu0 0.0
    %535 = vmatprep.subr.mxu0 0.0
    %536 = vmatpush1.msra.mxu0 0.0
    %537 = vmatprep.subr.mxu0 0.0
    %538 = vmatpush1.msra.mxu0 0.0
    %539 = vmatprep.subr.mxu0 0.0
    %540 = vmatpush1.msra.mxu0 0.0
    %541 = vmatprep.subr.mxu0 0.0
    %542 = vmatpush1.msra.mxu0 0.0
    %543 = vmatprep.mubr.f32.mxu0 0.0
    %544 = vmatmul.mubr.f32.gmra.mrb[0].mxu0 %v477
    %v545 = vpop.f32.mrb[0].mxu0
    %v546 = vadd.f32 0.0, %v545
    %v547 = vpop.f32.mrb[0].mxu0
    %548 = vdwg.mxu0
    %550 = vrot.lane.b32.xlu0 %v546, 40
    %v551 = vpop.permute.xlu0 %550
    %vm553 = vcmask 392512
    %554 = vst.msk [vmem:[#allocation7] sm:$0xff] %vm553, %v551
    %v555 = vld [vmem:[#allocation2 + $0x8] sm:$0xff]
    %557 = vrot.lane.b32.xlu0 %v555, 112
    %v558 = vpop.permute.xlu0 %557
    %v560 = vadd.f32 %v555, %v558
    %562 = vrot.lane.b32.xlu0 %v560, 64
    %v563 = vpop.permute.xlu0 %562
    %v564 = vsel %vm46, %v563, 0
    %566 = vmatprep.subr.mxu0 0.0
    %567 = vmatpush1.msra.mxu0 %v38
    %568 = vmatprep.subr.mxu0 0.0
    %569 = vmatpush1.msra.mxu0 %v39
    %570 = vmatprep.subr.mxu0 0.0
    %571 = vmatpush1.msra.mxu0 0.0
    %572 = vmatprep.subr.mxu0 0.0
    %573 = vmatpush1.msra.mxu0 0.0
    %574 = vmatprep.subr.mxu0 0.0
    %575 = vmatpush1.msra.mxu0 0.0
    %576 = vmatprep.subr.mxu0 0.0
    %577 = vmatpush1.msra.mxu0 0.0
    %578 = vmatprep.subr.mxu0 0.0
    %579 = vmatpush1.msra.mxu0 0.0
    %580 = vmatprep.subr.mxu0 0.0
    %581 = vmatpush1.msra.mxu0 0.0
    %582 = vmatprep.subr.mxu0 0.0
    %583 = vmatpush1.msra.mxu0 0.0
    %584 = vmatprep.subr.mxu0 0.0
    %585 = vmatpush1.msra.mxu0 0.0
    %586 = vmatprep.subr.mxu0 0.0
    %587 = vmatpush1.msra.mxu0 0.0
    %588 = vmatprep.subr.mxu0 0.0
    %589 = vmatpush1.msra.mxu0 0.0
    %590 = vmatprep.subr.mxu0 0.0
    %591 = vmatpush1.msra.mxu0 0.0
    %592 = vmatprep.subr.mxu0 0.0
    %593 = vmatpush1.msra.mxu0 0.0
    %594 = vmatprep.subr.mxu0 0.0
    %595 = vmatpush1.msra.mxu0 0.0
    %596 = vmatprep.subr.mxu0 0.0
    %597 = vmatpush1.msra.mxu0 0.0
    %598 = vmatprep.subr.mxu0 0.0
    %599 = vmatpush1.msra.mxu0 0.0
    %600 = vmatprep.subr.mxu0 0.0
    %601 = vmatpush1.msra.mxu0 0.0
    %602 = vmatprep.subr.mxu0 0.0
    %603 = vmatpush1.msra.mxu0 0.0
    %604 = vmatprep.subr.mxu0 0.0
    %605 = vmatpush1.msra.mxu0 0.0
    %606 = vmatprep.subr.mxu0 0.0
    %607 = vmatpush1.msra.mxu0 0.0
    %608 = vmatprep.subr.mxu0 0.0
    %609 = vmatpush1.msra.mxu0 0.0
    %610 = vmatprep.subr.mxu0 0.0
    %611 = vmatpush1.msra.mxu0 0.0
    %612 = vmatprep.subr.mxu0 0.0
    %613 = vmatpush1.msra.mxu0 0.0
    %614 = vmatprep.subr.mxu0 0.0
    %615 = vmatpush1.msra.mxu0 0.0
    %616 = vmatprep.subr.mxu0 0.0
    %617 = vmatpush1.msra.mxu0 0.0
    %618 = vmatprep.subr.mxu0 0.0
    %619 = vmatpush1.msra.mxu0 0.0
    %620 = vmatprep.subr.mxu0 0.0
    %621 = vmatpush1.msra.mxu0 0.0
    %622 = vmatprep.subr.mxu0 0.0
    %623 = vmatpush1.msra.mxu0 0.0
    %624 = vmatprep.subr.mxu0 0.0
    %625 = vmatpush1.msra.mxu0 0.0
    %626 = vmatprep.subr.mxu0 0.0
    %627 = vmatpush1.msra.mxu0 0.0
    %628 = vmatprep.subr.mxu0 0.0
    %629 = vmatpush1.msra.mxu0 0.0
    %630 = vmatprep.mubr.f32.mxu0 0.0
    %631 = vmatmul.mubr.f32.gmra.mrb[0].mxu0 %v564
    %v632 = vpop.f32.mrb[0].mxu0
    %v633 = vadd.f32 0.0, %v632
    %v634 = vpop.f32.mrb[0].mxu0
    %635 = vdwg.mxu0
    %637 = vrot.lane.b32.xlu0 %v633, 48
    %v638 = vpop.permute.xlu0 %637
    %vm640 = vcmask 458112
    %641 = vst.msk [vmem:[#allocation7] sm:$0xff] %vm640, %v638
    %v642 = vld [vmem:[#allocation2 + $0x8] sm:$0xff]
    %644 = vrot.lane.b32.xlu0 %v642, 112
    %v645 = vpop.permute.xlu0 %644
    %v647 = vadd.f32 %v642, %v645
    %649 = vrot.lane.b32.xlu0 %v647, 32
    %v650 = vpop.permute.xlu0 %649
    %v651 = vsel %vm46, %v650, 0
    %653 = vmatprep.subr.mxu0 0.0
    %654 = vmatpush1.msra.mxu0 %v38
    %655 = vmatprep.subr.mxu0 0.0
    %656 = vmatpush1.msra.mxu0 %v39
    %657 = vmatprep.subr.mxu0 0.0
    %658 = vmatpush1.msra.mxu0 0.0
    %659 = vmatprep.subr.mxu0 0.0
    %660 = vmatpush1.msra.mxu0 0.0
    %661 = vmatprep.subr.mxu0 0.0
    %662 = vmatpush1.msra.mxu0 0.0
    %663 = vmatprep.subr.mxu0 0.0
    %664 = vmatpush1.msra.mxu0 0.0
    %665 = vmatprep.subr.mxu0 0.0
    %666 = vmatpush1.msra.mxu0 0.0
    %667 = vmatprep.subr.mxu0 0.0
    %668 = vmatpush1.msra.mxu0 0.0
    %669 = vmatprep.subr.mxu0 0.0
    %670 = vmatpush1.msra.mxu0 0.0
    %671 = vmatprep.subr.mxu0 0.0
    %672 = vmatpush1.msra.mxu0 0.0
    %673 = vmatprep.subr.mxu0 0.0
    %674 = vmatpush1.msra.mxu0 0.0
    %675 = vmatprep.subr.mxu0 0.0
    %676 = vmatpush1.msra.mxu0 0.0
    %677 = vmatprep.subr.mxu0 0.0
    %678 = vmatpush1.msra.mxu0 0.0
    %679 = vmatprep.subr.mxu0 0.0
    %680 = vmatpush1.msra.mxu0 0.0
    %681 = vmatprep.subr.mxu0 0.0
    %682 = vmatpush1.msra.mxu0 0.0
    %683 = vmatprep.subr.mxu0 0.0
    %684 = vmatpush1.msra.mxu0 0.0
    %685 = vmatprep.subr.mxu0 0.0
    %686 = vmatpush1.msra.mxu0 0.0
    %687 = vmatprep.subr.mxu0 0.0
    %688 = vmatpush1.msra.mxu0 0.0
    %689 = vmatprep.subr.mxu0 0.0
    %690 = vmatpush1.msra.mxu0 0.0
    %691 = vmatprep.subr.mxu0 0.0
    %692 = vmatpush1.msra.mxu0 0.0
    %693 = vmatprep.subr.mxu0 0.0
    %694 = vmatpush1.msra.mxu0 0.0
    %695 = vmatprep.subr.mxu0 0.0
    %696 = vmatpush1.msra.mxu0 0.0
    %697 = vmatprep.subr.mxu0 0.0
    %698 = vmatpush1.msra.mxu0 0.0
    %699 = vmatprep.subr.mxu0 0.0
    %700 = vmatpush1.msra.mxu0 0.0
    %701 = vmatprep.subr.mxu0 0.0
    %702 = vmatpush1.msra.mxu0 0.0
    %703 = vmatprep.subr.mxu0 0.0
    %704 = vmatpush1.msra.mxu0 0.0
    %705 = vmatprep.subr.mxu0 0.0
    %706 = vmatpush1.msra.mxu0 0.0
    %707 = vmatprep.subr.mxu0 0.0
    %708 = vmatpush1.msra.mxu0 0.0
    %709 = vmatprep.subr.mxu0 0.0
    %710 = vmatpush1.msra.mxu0 0.0
    %711 = vmatprep.subr.mxu0 0.0
    %712 = vmatpush1.msra.mxu0 0.0
    %713 = vmatprep.subr.mxu0 0.0
    %714 = vmatpush1.msra.mxu0 0.0
    %715 = vmatprep.subr.mxu0 0.0
    %716 = vmatpush1.msra.mxu0 0.0
    %717 = vmatprep.mubr.f32.mxu0 0.0
    %718 = vmatmul.mubr.f32.gmra.mrb[0].mxu0 %v651
    %v719 = vpop.f32.mrb[0].mxu0
    %v720 = vadd.f32 0.0, %v719
    %v721 = vpop.f32.mrb[0].mxu0
    %722 = vdwg.mxu0
    %724 = vrot.lane.b32.xlu0 %v720, 56
    %v725 = vpop.permute.xlu0 %724
    %vm727 = vcmask 523712
    %728 = vst.msk [vmem:[#allocation7] sm:$0xff] %vm727, %v725
    // Predicated region
    $region18: #{tpu_custom_call.1} parent=1 // pred_check
      _
    $region19: #{tpu_custom_call.1} parent=1 // pred_check_branch
      %730 = sbr.rel (0) target = $region21
    $region20: #{tpu_custom_call.1} parent=1 // pred_region
      %s732 = ssub.s32 128, 128
      %733 = vsyncadd [#allocation4], %s732
      %s735 = sshll.u32 [#allocation7], 4
      %s736 = int_to_ptr.vmem [resolvable:$true] %s735
      %738 = dma.vmem_to_hbm [thread:$0]  %s736, 128, %s2, [#allocation4]
    $region21: #{tpu_custom_call.1} parent=1 // pred_fallthru
      _
    // Predicated region
    $region22: #{tpu_custom_call.1} parent=1 // pred_check
      _
    $region23: #{tpu_custom_call.1} parent=1 // pred_check_branch
      %740 = sbr.rel (0) target = $region25
    $region24: #{tpu_custom_call.1} parent=1 // pred_region
      %741 = dma.done [#allocation4], 128
    $region25: #{tpu_custom_call.1} parent=1 // pred_fallthru
      _
    %742 = vsyncpa [#allocation3], 1
    %743 = vsyncpa [#allocation6], 1
    %744 = vsyncpa [#allocation4], 1

</llo_original>
